<compile_context>
chip_gen: v6e
topology: v6e:2x2x1
jax: 0.10.0
libtpu: 0.0.40
codegen_flags: <defaults>
</compile_context>

<pallas_src>
import functools

import jax
import jax.numpy as jnp
import numpy as np
from jax import lax
from jax.experimental import pallas as pl
from jax.experimental.pallas import tpu as pltpu


def _round_up(n, m):
    return ((n + m - 1) // m) * m


def _pad_axis(a, axis, target):
    if a.shape[axis] == target:
        return a
    pads = [(0, 0)] * a.ndim
    pads[axis] = (0, target - a.shape[axis])
    return jnp.pad(a, pads)


def pam_kernel(x_ref, w_vq_ref, b_vq_ref, w_k_ref, b_k_ref, gamma_ref,
               o_ref, k_scr, proj_scr, *acc_opt,
               Bb, L, Tq, C_pad, Cq_pad, mxu_dtype):
    """Grid: (batch block b, i-tile it).

    energy[t, j] = <q_t, k_j>, softmax over j (full L, always local -> exact),
    out[j, c] += att[t, j] * v[t, c] accumulated over i-tiles of t.
    """
    it = pl.program_id(1)
    last_it = pl.num_programs(1) - 1
    # f32 outputs accumulate directly into the it-resident output block; other
    # dtypes get a dedicated f32 scratch accumulator.
    acc = acc_opt[0] if acc_opt else o_ref

    # ---- once per batch block: K projection for the full sequence as ONE
    # tall MXU matmul over Bb*L rows, stored in the MXU operand dtype.
    @pl.when(it == 0)
    def _project_k():
        xk = x_ref[...].reshape(Bb * L, C_pad).astype(mxu_dtype)
        k = jnp.dot(xk, w_k_ref[...],
                    preferred_element_type=jnp.float32) + b_k_ref[...]
        k_scr[...] = k.astype(k_scr.dtype).reshape(Bb, L, Cq_pad)

    # ---- every i-tile: slice the resident x block (single HBM read of x) and
    # run the fused V|Q projection as one flattened matmul; stash it in VMEM
    # scratch so the per-batch loop below can index it dynamically.
    row0 = pl.multiple_of(it * Tq, Tq)
    xt = x_ref[:, pl.ds(row0, Tq), :]                             # (Bb, Tq, C_pad)
    xt_f = xt.reshape(Bb * Tq, C_pad).astype(mxu_dtype)
    proj = jnp.dot(xt_f, w_vq_ref[...],
                   preferred_element_type=jnp.float32) + b_vq_ref[...]
    proj_scr[...] = proj.astype(proj_scr.dtype).reshape(Bb, Tq, C_pad + Cq_pad)

    is_first = it == 0

    # fori_loop (not a Python unroll) bounds the (Tq, L) energy/exp live range
    # to a single batch element.
    def body(b, carry):
        proj_b = proj_scr[b]                              # (Tq, C_pad + Cq_pad)
        v_b = proj_b[:, :C_pad]             # both slices start 128-lane aligned
        q_b = proj_b[:, C_pad:]
        k_b = k_scr[b]                                    # (L, Cq_pad)

        # energy[t, j] = <q_t, k_j>   (flash-attention q @ k^T contraction).
        # TODO(synk): verify in the Mosaic bundle dump that neither this nor
        # the transposed-LHS contraction below materializes a vxpose.
        e = lax.dot_general(q_b, k_b, (((1,), (1,)), ((), ())),
                            preferred_element_type=jnp.float32)    # (Tq, L) f32
        e = e - jnp.max(e, axis=-1, keepdims=True)                 # softmax in f32
        p = jnp.exp(e)
        inv = 1.0 / jnp.sum(p, axis=-1, keepdims=True)             # exact norm
        v_s = (v_b * inv).astype(mxu_dtype)        # fold 1/rowsum into V (Tq, C_pad)
        p_m = p.astype(mxu_dtype)

        # out[j, c] += sum_t p[t, j] * v_s[t, c]  (transposed-LHS contraction;
        # the (L, L) attention transpose is never materialized)
        contrib = lax.dot_general(p_m, v_s, (((0,), (0,)), ((), ())),
                                  preferred_element_type=jnp.float32)  # (L, C_pad)

        @pl.when(is_first)
        def _():                       # first i-tile: plain write, no zero fill
            acc[b] = contrib.astype(acc.dtype)

        @pl.when(jnp.logical_not(is_first))
        def _():
            acc[b] = acc[b] + contrib.astype(acc.dtype)

        return carry

    lax.fori_loop(0, Bb, body, 0)

    # ---- once per batch block: gamma-scaled residual, one dense lane-aligned
    # store of the full (Bb, L, C_pad) slab.
    @pl.when(it == last_it)
    def _finalize():
        gamma = gamma_ref[0]
        xf = x_ref[...].astype(jnp.float32)
        o_ref[...] = (gamma * acc[...].astype(jnp.float32) + xf).astype(o_ref.dtype)


def _default_vmem_limit():
    # Generation-aware VMEM budget with headroom under the per-TensorCore
    # physical capacity (v7x: 64 MiB/TC -> ~44 MiB; v5e/v6e: 128 MiB -> ~100 MiB).
    cap = None
    try:
        cap = getattr(pltpu.get_tpu_info(), "vmem_capacity_bytes", None)
    except Exception:
        cap = None
    if cap is None:
        return 48 * 1024 * 1024
    if cap <= 80 * 1024 * 1024:
        return 44 * 1024 * 1024
    return 100 * 1024 * 1024


def _pick_batch_block(B, L, C_pad, Cq_pad, x_bytes, out_bytes, mxu_bytes,
                      need_acc, vmem_budget, cap=16):
    per_b = (2 * L * C_pad * x_bytes        # resident x block (pipelined x2)
             + 2 * L * C_pad * out_bytes    # resident out block (pipelined x2)
             + L * Cq_pad * mxu_bytes)      # K scratch
    if need_acc:
        per_b += L * C_pad * 4              # separate f32 accumulator
    mem_cap = max(1, (vmem_budget // 2) // max(1, per_b))
    cap = max(1, min(cap, mem_cap))
    cands = [d for d in range(1, min(B, cap) + 1) if B % d == 0]
    if not cands:
        return 1
    multi = [d for d in cands if B // d >= 2]   # keep the parallel batch axis
    return max(multi) if multi else max(cands)  # splittable (megacore / 2 TCs)


def _pick_q_tile(L, Bb, C_pad, Cq_pad, mxu_bytes, vmem_budget, row_cap=512):
    if L <= 256:
        return L                                  # full L: always spec-legal
    budget = vmem_budget // 4                     # transient e/p + proj scratch
    per_row = 2 * L * 4 + Bb * (C_pad + Cq_pad) * (mxu_bytes + 4)
    max_rows = max(128, budget // max(1, per_row))
    max_rows = min(max_rows, row_cap, L)
    # Prefer 256-aligned tiles (v6e/v7x MXU cadence), then 128 (v5e), then 8.
    for step in (256, 128, 8):
        t = (max_rows // step) * step
        while t >= step:
            if L % t == 0:
                return t
            t -= step
    # TODO(synk): awkward L with no small divisor falls back to full L, which
    # can exceed the VMEM model for very large L.
    return L


def pam_forward(x, wq, bq, wk, bk, wv, bv, gamma, *,
                batch_block=None, q_tile=None, vmem_limit_bytes=None,
                mxu_dtype=jnp.bfloat16):
    """x: (B, L, C).  Returns (B, L, C), matching PAM_ModuleM.forward."""
    B, L, C = x.shape
    Cq = wq.shape[0]
    C_pad = _round_up(C, 128)    # lane-dense output & aligned V|Q slices
    Cq_pad = _round_up(Cq, 128)  # MXU/lane-dense Q/K channels (zero pad, exact)

    if vmem_limit_bytes is None:
        vmem_limit_bytes = _default_vmem_limit()

    out_dtype = x.dtype
    use_out_acc = jnp.dtype(out_dtype) == jnp.dtype(jnp.float32)
    x_bytes = jnp.dtype(x.dtype).itemsize
    mxu_bytes = jnp.dtype(mxu_dtype).itemsize

    Bb = batch_block if batch_block is not None else _pick_batch_block(
        B, L, C_pad, Cq_pad, x_bytes, x_bytes, mxu_bytes,
        not use_out_acc, vmem_limit_bytes)
    Tq = q_tile if q_tile is not None else _pick_q_tile(
        L, Bb, C_pad, Cq_pad, mxu_bytes, vmem_limit_bytes)
    assert B % Bb == 0 and L % Tq == 0

    # Zero-padded, fused, pre-transposed projection weights (padding is exact:
    # padded q/k/v channels have zero weights AND zero biases).
    wq_p = _pad_axis(_pad_axis(wq, 1, C_pad), 0, Cq_pad)     # (Cq_pad, C_pad)
    wk_p = _pad_axis(_pad_axis(wk, 1, C_pad), 0, Cq_pad)
    wv_p = _pad_axis(_pad_axis(wv, 1, C_pad), 0, C_pad)      # (C_pad, C_pad)
    bq_p = _pad_axis(bq, 0, Cq_pad)
    bk_p = _pad_axis(bk, 0, Cq_pad)
    bv_p = _pad_axis(bv, 0, C_pad)

    w_vq = jnp.concatenate([wv_p, wq_p], axis=0).T.astype(mxu_dtype)  # (C_pad, C_pad+Cq_pad)
    b_vq = jnp.concatenate([bv_p, bq_p], axis=0).reshape(1, C_pad + Cq_pad)
    b_vq = b_vq.astype(jnp.float32)
    w_k = wk_p.T.astype(mxu_dtype)                                    # (C_pad, Cq_pad)
    b_k = bk_p.reshape(1, Cq_pad).astype(jnp.float32)
    gamma1 = jnp.asarray(gamma, jnp.float32).reshape(1)
    x_p = _pad_axis(x, 2, C_pad)                                      # (B, L, C_pad)

    kernel = functools.partial(pam_kernel, Bb=Bb, L=L, Tq=Tq,
                               C_pad=C_pad, Cq_pad=Cq_pad, mxu_dtype=mxu_dtype)

    scratch = [pltpu.VMEM((Bb, L, Cq_pad), mxu_dtype),            # K (full seq)
               pltpu.VMEM((Bb, Tq, C_pad + Cq_pad), mxu_dtype)]   # V|Q per i-tile
    if not use_out_acc:
        scratch.append(pltpu.VMEM((Bb, L, C_pad), jnp.float32))   # f32 accumulator

    out_p = pl.pallas_call(
        kernel,
        out_shape=jax.ShapeDtypeStruct((B, L, C_pad), out_dtype),
        grid_spec=pltpu.PrefetchScalarGridSpec(
            num_scalar_prefetch=0,
            grid=(B // Bb, L // Tq),
            in_specs=[
                # full sequence; i-tile-invariant block index -> fetched once
                # per batch block, sliced in-kernel (x read from HBM only once)
                pl.BlockSpec((Bb, L, C_pad), lambda b, it: (b, 0, 0)),
                pl.BlockSpec((C_pad, C_pad + Cq_pad), lambda b, it: (0, 0)),
                pl.BlockSpec((1, C_pad + Cq_pad), lambda b, it: (0, 0)),
                pl.BlockSpec((C_pad, Cq_pad), lambda b, it: (0, 0)),
                pl.BlockSpec((1, Cq_pad), lambda b, it: (0, 0)),
                pl.BlockSpec(memory_space=pltpu.MemorySpace.SMEM),   # gamma
            ],
            out_specs=pl.BlockSpec((Bb, L, C_pad), lambda b, it: (b, 0, 0)),
            scratch_shapes=scratch,
        ),
        compiler_params=pltpu.CompilerParams(
            dimension_semantics=("parallel", "arbitrary"),
            vmem_limit_bytes=vmem_limit_bytes),
    )(x_p, w_vq, b_vq, w_k, b_k, gamma1)

    return out_p if C_pad == C else out_p[:, :, :C]


def pam_reference_np(x, wq, bq, wk, bk, wv, bv, gamma):
    """float64 numpy transcription of the PyTorch forward (x is (B, L, C))."""
    x = np.asarray(x, np.float64)
    wq, bq = np.asarray(wq, np.float64), np.asarray(bq, np.float64)
    wk, bk = np.asarray(wk, np.float64), np.asarray(bk, np.float64)
    wv, bv = np.asarray(wv, np.float64), np.asarray(bv, np.float64)
    gamma = float(gamma)

    xp = np.transpose(x, (0, 2, 1))                               # (B, C, L)
    conv = lambda w, b, inp: np.einsum('oc,bcl->bol', w, inp) + b[None, :, None]
    q = np.transpose(conv(wq, bq, xp), (0, 2, 1))                 # (B, L, Cq)
    k = conv(wk, bk, xp)                                          # (B, Cq, L)
    energy = np.einsum('blc,bcm->blm', q, k)                      # (B, L, L)
    energy -= energy.max(axis=-1, keepdims=True)
    p = np.exp(energy)
    att = p / p.sum(axis=-1, keepdims=True)
    v = conv(wv, bv, xp)                                          # (B, C, L)
    out = np.einsum('bcl,blm->bcm', v, att)                       # (B, C, L)
    out = gamma * out + xp
    return np.transpose(out, (0, 2, 1))                           # (B, L, C)


if __name__ == "__main__":
    B, L, C = 8, 16, 20          # in_dim = 20  ->  Cq = C // 5 = 4
    Cq = C // 5

    key = jax.random.PRNGKey(0)
    kx, kq, kbq, kk, kbk, kv, kbv = jax.random.split(key, 7)

    x = jax.random.normal(kx, (B, L, C), dtype=jnp.float32)

    # Conv1d(kernel_size=1) weights collapse to (out, in); default-init range.
    scale = 1.0 / np.sqrt(C)
    wq = jax.random.uniform(kq, (Cq, C), jnp.float32, -scale, scale)
    bq = jax.random.uniform(kbq, (Cq,), jnp.float32, -scale, scale)
    wk = jax.random.uniform(kk, (Cq, C), jnp.float32, -scale, scale)
    bk = jax.random.uniform(kbk, (Cq,), jnp.float32, -scale, scale)
    wv = jax.random.uniform(kv, (C, C), jnp.float32, -scale, scale)
    bv = jax.random.uniform(kbv, (C,), jnp.float32, -scale, scale)
    # PyTorch inits gamma to 0 (residual-only); use a nonzero value so the
    # attention path is actually exercised by the checks.
    gamma = jnp.float32(0.5)

    ref = pam_reference_np(x, wq, bq, wk, bk, wv, bv, gamma)

    # Exact-math path (f32 MXU operands): tight correctness check.
    out_exact = jax.block_until_ready(
        pam_forward(x, wq, bq, wk, bk, wv, bv, gamma, mxu_dtype=jnp.float32))
    np.testing.assert_allclose(np.asarray(out_exact, np.float64), ref,
                               rtol=1e-4, atol=1e-4)

    # Default fast path: bf16 MXU operands with f32 accumulation / f32 softmax.
    # Tolerance reflects bf16 quantization of q/k/p/v (~1e-2 relative).
    out_fast = jax.block_until_ready(
        pam_forward(x, wq, bq, wk, bk, wv, bv, gamma))
    np.testing.assert_allclose(np.asarray(out_fast, np.float64), ref,
                               rtol=5e-2, atol=5e-2)

    print("KERNEL_OK")
</pallas_src>

<mosaic_0001>
module attributes {stable_mosaic.version = 11 : i64} {
  func.func @pam_kernel(%arg0: i32, %arg1: i32, %arg2: memref<4x16x128xf32, #tpu.memory_space<vmem>>, %arg3: memref<128x256xf32, #tpu.memory_space<vmem>>, %arg4: memref<1x256xf32, #tpu.memory_space<vmem>>, %arg5: memref<128x128xf32, #tpu.memory_space<vmem>>, %arg6: memref<1x128xf32, #tpu.memory_space<vmem>>, %arg7: memref<1xf32, #tpu.memory_space<smem>>, %arg8: memref<4x16x128xf32, #tpu.memory_space<vmem>>, %arg9: memref<4x16x128xf32, #tpu.memory_space<vmem>>, %arg10: memref<4x16x256xf32, #tpu.memory_space<vmem>>) attributes {dimension_semantics = [#tpu.dimension_semantics<parallel>, #tpu.dimension_semantics<arbitrary>], iteration_bounds = array<i64: 2, 1>, scalar_prefetch = 0 : i64, scratch_operands = 2 : i64, tpu.core_type = #tpu.core_type<tc>, window_params = [{transform_indices = @transform_0, window_bounds = array<i64: 4, 16, 128>}, {pipeline_mode = #tpu.pipeline_mode<synchronous>, transform_indices = @transform_1, window_bounds = array<i64: 128, 256>}, {pipeline_mode = #tpu.pipeline_mode<synchronous>, transform_indices = @transform_2, window_bounds = array<i64: 1, 256>}, {pipeline_mode = #tpu.pipeline_mode<synchronous>, transform_indices = @transform_3, window_bounds = array<i64: 128, 128>}, {pipeline_mode = #tpu.pipeline_mode<synchronous>, transform_indices = @transform_4, window_bounds = array<i64: 1, 128>}, {transform_indices = @transform_5, window_bounds = array<i64: 1>}, {transform_indices = @transform_6, window_bounds = array<i64: 4, 16, 128>}]} {
    %c0_i32 = arith.constant 0 : i32
    %0 = arith.cmpi eq, %arg1, %c0_i32 : i32
    %1 = arith.extui %0 : i1 to i32
    %c0_i32_0 = arith.constant 0 : i32
    %2 = arith.cmpi ne, %1, %c0_i32_0 : i32
    scf.if %2 {
      %c0_14 = arith.constant 0 : index
      %c0_15 = arith.constant 0 : index
      %c0_16 = arith.constant 0 : index
      %20 = vector.load %arg2[%c0_14, %c0_15, %c0_16] : memref<4x16x128xf32, #tpu.memory_space<vmem>>, vector<4x16x128xf32>
      %21 = vector.shape_cast %20 : vector<4x16x128xf32> to vector<64x128xf32>
      %c0_17 = arith.constant 0 : index
      %c0_18 = arith.constant 0 : index
      %22 = vector.load %arg5[%c0_17, %c0_18] : memref<128x128xf32, #tpu.memory_space<vmem>>, vector<128x128xf32>
      %cst_19 = arith.constant dense<0.000000e+00> : vector<64x128xf32>
      %23 = tpu.matmul %21, %22, %cst_19 {dimension_numbers = #tpu.dot_dimension_numbers<[1], [0], [0], [1], [0, 0, 1, 1], [], []>} : vector<64x128xf32>, vector<128x128xf32>, vector<64x128xf32> -> vector<64x128xf32>
      %c0_20 = arith.constant 0 : index
      %c0_21 = arith.constant 0 : index
      %24 = vector.load %arg6[%c0_20, %c0_21] : memref<1x128xf32, #tpu.memory_space<vmem>>, vector<1x128xf32>
      %25 = vector.broadcast %24 : vector<1x128xf32> to vector<64x128xf32>
      %26 = arith.addf %23, %25 : vector<64x128xf32>
      %27 = vector.shape_cast %26 : vector<64x128xf32> to vector<4x16x128xf32>
      %c0_22 = arith.constant 0 : index
      %c0_23 = arith.constant 0 : index
      %c0_24 = arith.constant 0 : index
      %28 = vector.load %arg9[%c0_22, %c0_23, %c0_24] : memref<4x16x128xf32, #tpu.memory_space<vmem>>, vector<4x16x128xf32>
      tpu.vector_store %arg9[%c0_22, %c0_23, %c0_24], %27 {strides = array<i32>} : memref<4x16x128xf32, #tpu.memory_space<vmem>>, vector<4x16x128xf32>,
    } else {
    }
    %c16_i32 = arith.constant 16 : i32
    %3 = arith.muli %arg1, %c16_i32 : i32
    %4 = tpu.assume_multiple %3, 16 : i32
    %c0 = arith.constant 0 : index
    %5 = arith.index_cast %4 : i32 to index
    %c0_1 = arith.constant 0 : index
    %6 = vector.load %arg2[%c0, %5, %c0_1] : memref<4x16x128xf32, #tpu.memory_space<vmem>>, vector<4x16x128xf32>
    %7 = vector.shape_cast %6 : vector<4x16x128xf32> to vector<64x128xf32>
    %c0_2 = arith.constant 0 : index
    %c0_3 = arith.constant 0 : index
    %8 = vector.load %arg3[%c0_2, %c0_3] : memref<128x256xf32, #tpu.memory_space<vmem>>, vector<128x256xf32>
    %cst = arith.constant dense<0.000000e+00> : vector<64x256xf32>
    %9 = tpu.matmul %7, %8, %cst {dimension_numbers = #tpu.dot_dimension_numbers<[1], [0], [0], [1], [0, 0, 1, 1], [], []>} : vector<64x128xf32>, vector<128x256xf32>, vector<64x256xf32> -> vector<64x256xf32>
    %c0_4 = arith.constant 0 : index
    %c0_5 = arith.constant 0 : index
    %10 = vector.load %arg4[%c0_4, %c0_5] : memref<1x256xf32, #tpu.memory_space<vmem>>, vector<1x256xf32>
    %11 = vector.broadcast %10 : vector<1x256xf32> to vector<64x256xf32>
    %12 = arith.addf %9, %11 : vector<64x256xf32>
    %13 = vector.shape_cast %12 : vector<64x256xf32> to vector<4x16x256xf32>
    %c0_6 = arith.constant 0 : index
    %c0_7 = arith.constant 0 : index
    %c0_8 = arith.constant 0 : index
    %14 = vector.load %arg10[%c0_6, %c0_7, %c0_8] : memref<4x16x256xf32, #tpu.memory_space<vmem>>, vector<4x16x256xf32>
    tpu.vector_store %arg10[%c0_6, %c0_7, %c0_8], %13 {strides = array<i32>} : memref<4x16x256xf32, #tpu.memory_space<vmem>>, vector<4x16x256xf32>,
    %c0_i32_9 = arith.constant 0 : i32
    %15 = arith.cmpi eq, %arg1, %c0_i32_9 : i32
    %c0_i32_10 = arith.constant 0 : i32
    %c4_i32 = arith.constant 4 : i32
    %16 = arith.addi %c0_i32_10, %c4_i32 : i32
    %c1_i32 = arith.constant 1 : i32
    scf.for %arg11 = %c0_i32_10 to %16 step %c1_i32  : i32 {
      %20 = arith.index_cast %arg11 : i32 to index
      %c0_14 = arith.constant 0 : index
      %c0_15 = arith.constant 0 : index
      %21 = vector.load %arg10[%20, %c0_14, %c0_15] : memref<4x16x256xf32, #tpu.memory_space<vmem>>, vector<1x16x256xf32>
      %22 = vector.shape_cast %21 : vector<1x16x256xf32> to vector<16x256xf32>
      %23 = vector.extract_strided_slice %22 {offsets = [0, 0], sizes = [16, 128], strides = [1, 1]} : vector<16x256xf32> to vector<16x128xf32>
      %24 = vector.extract_strided_slice %22 {offsets = [0, 128], sizes = [16, 128], strides = [1, 1]} : vector<16x256xf32> to vector<16x128xf32>
      %25 = arith.index_cast %arg11 : i32 to index
      %c0_16 = arith.constant 0 : index
      %c0_17 = arith.constant 0 : index
      %26 = vector.load %arg9[%25, %c0_16, %c0_17] : memref<4x16x128xf32, #tpu.memory_space<vmem>>, vector<1x16x128xf32>
      %27 = vector.shape_cast %26 : vector<1x16x128xf32> to vector<16x128xf32>
      %cst_18 = arith.constant dense<0.000000e+00> : vector<16x16xf32>
      %28 = tpu.matmul %24, %27, %cst_18 {dimension_numbers = #tpu.dot_dimension_numbers<[1], [1], [0], [0], [0, 0, 1, 0], [], []>} : vector<16x128xf32>, vector<16x128xf32>, vector<16x16xf32> -> vector<16x16xf32>
      %cst_19 = arith.constant dense<0xFF800000> : vector<16xf32>
      %29 = vector.multi_reduction <maximumf>, %28, %cst_19 [1] : vector<16x16xf32> to vector<16xf32>
      %30 = vector.shape_cast %29 : vector<16xf32> to vector<16x1xf32>
      %31 = vector.broadcast %30 : vector<16x1xf32> to vector<16x16xf32>
      %32 = arith.subf %28, %31 : vector<16x16xf32>
      %33 = math.exp %32 : vector<16x16xf32>
      %cst_20 = arith.constant dense<0.000000e+00> : vector<16xf32>
      %34 = vector.multi_reduction <add>, %33, %cst_20 [1] : vector<16x16xf32> to vector<16xf32>
      %35 = vector.shape_cast %34 : vector<16xf32> to vector<16x1xf32>
      %cst_21 = arith.constant 1.000000e+00 : f32
      %36 = vector.broadcast %cst_21 : f32 to vector<16x1xf32>
      %37 = arith.divf %36, %35 : vector<16x1xf32>
      %38 = vector.broadcast %37 : vector<16x1xf32> to vector<16x128xf32>
      %39 = arith.mulf %23, %38 : vector<16x128xf32>
      %cst_22 = arith.constant dense<0.000000e+00> : vector<16x128xf32>
      %40 = tpu.matmul %33, %39, %cst_22 {dimension_numbers = #tpu.dot_dimension_numbers<[0], [0], [1], [1], [0, 1, 1, 1], [], []>} : vector<16x16xf32>, vector<16x128xf32>, vector<16x128xf32> -> vector<16x128xf32>
      %41 = arith.extui %15 : i1 to i32
      %c0_i32_23 = arith.constant 0 : i32
      %42 = arith.cmpi ne, %41, %c0_i32_23 : i32
      scf.if %42 {
        %46 = arith.index_cast %arg11 : i32 to index
        %c0_25 = arith.constant 0 : index
        %c0_26 = arith.constant 0 : index
        %47 = vector.load %arg8[%46, %c0_25, %c0_26] : memref<4x16x128xf32, #tpu.memory_space<vmem>>, vector<1x16x128xf32>
        %48 = vector.shape_cast %47 : vector<1x16x128xf32> to vector<16x128xf32>
        %49 = vector.shape_cast %40 : vector<16x128xf32> to vector<1x16x128xf32>
        tpu.vector_store %arg8[%46, %c0_25, %c0_26], %49 {strides = array<i32>} : memref<4x16x128xf32, #tpu.memory_space<vmem>>, vector<1x16x128xf32>,
      } else {
      }
      %true = arith.constant true
      %43 = arith.xori %15, %true : i1
      %44 = arith.extui %43 : i1 to i32
      %c0_i32_24 = arith.constant 0 : i32
      %45 = arith.cmpi ne, %44, %c0_i32_24 : i32
      scf.if %45 {
        %46 = arith.index_cast %arg11 : i32 to index
        %c0_25 = arith.constant 0 : index
        %c0_26 = arith.constant 0 : index
        %47 = vector.load %arg8[%46, %c0_25, %c0_26] : memref<4x16x128xf32, #tpu.memory_space<vmem>>, vector<1x16x128xf32>
        %48 = vector.shape_cast %47 : vector<1x16x128xf32> to vector<16x128xf32>
        %49 = arith.addf %48, %40 : vector<16x128xf32>
        %50 = arith.index_cast %arg11 : i32 to index
        %c0_27 = arith.constant 0 : index
        %c0_28 = arith.constant 0 : index
        %51 = vector.load %arg8[%50, %c0_27, %c0_28] : memref<4x16x128xf32, #tpu.memory_space<vmem>>, vector<1x16x128xf32>
        %52 = vector.shape_cast %51 : vector<1x16x128xf32> to vector<16x128xf32>
        %53 = vector.shape_cast %49 : vector<16x128xf32> to vector<1x16x128xf32>
        tpu.vector_store %arg8[%50, %c0_27, %c0_28], %53 {strides = array<i32>} : memref<4x16x128xf32, #tpu.memory_space<vmem>>, vector<1x16x128xf32>,
      } else {
      }
    }
    %c4_i32_11 = arith.constant 4 : i32
    %c0_i32_12 = arith.constant 0 : i32
    %17 = arith.cmpi eq, %arg1, %c0_i32_12 : i32
    %18 = arith.extui %17 : i1 to i32
    %c0_i32_13 = arith.constant 0 : i32
    %19 = arith.cmpi ne, %18, %c0_i32_13 : i32
    scf.if %19 {
      %c0_14 = arith.constant 0 : index
      %20 = memref.load %arg7[%c0_14] : memref<1xf32, #tpu.memory_space<smem>>
      %c0_15 = arith.constant 0 : index
      %c0_16 = arith.constant 0 : index
      %c0_17 = arith.constant 0 : index
      %21 = vector.load %arg2[%c0_15, %c0_16, %c0_17] : memref<4x16x128xf32, #tpu.memory_space<vmem>>, vector<4x16x128xf32>
      %c0_18 = arith.constant 0 : index
      %c0_19 = arith.constant 0 : index
      %c0_20 = arith.constant 0 : index
      %22 = vector.load %arg8[%c0_18, %c0_19, %c0_20] : memref<4x16x128xf32, #tpu.memory_space<vmem>>, vector<4x16x128xf32>
      %23 = vector.broadcast %20 : f32 to vector<4x16x128xf32>
      %24 = arith.mulf %23, %22 : vector<4x16x128xf32>
      %25 = arith.addf %24, %21 : vector<4x16x128xf32>
      %c0_21 = arith.constant 0 : index
      %c0_22 = arith.constant 0 : index
      %c0_23 = arith.constant 0 : index
      %26 = vector.load %arg8[%c0_21, %c0_22, %c0_23] : memref<4x16x128xf32, #tpu.memory_space<vmem>>, vector<4x16x128xf32>
      tpu.vector_store %arg8[%c0_21, %c0_22, %c0_23], %25 {strides = array<i32>} : memref<4x16x128xf32, #tpu.memory_space<vmem>>, vector<4x16x128xf32>,
    } else {
    }
    return
  }
  func.func @transform_0(%arg0: i32, %arg1: i32) -> (i32, i32, i32) {
    %c0_i32 = arith.constant 0 : i32
    %c0_i32_0 = arith.constant 0 : i32
    %c0_i32_1 = arith.constant 0 : i32
    return %arg0, %c0_i32, %c0_i32_0 : i32, i32, i32
  }
  func.func @transform_1(%arg0: i32, %arg1: i32) -> (i32, i32) {
    %c0_i32 = arith.constant 0 : i32
    %c0_i32_0 = arith.constant 0 : i32
    %c0_i32_1 = arith.constant 0 : i32
    return %c0_i32, %c0_i32_0 : i32, i32
  }
  func.func @transform_2(%arg0: i32, %arg1: i32) -> (i32, i32) {
    %c0_i32 = arith.constant 0 : i32
    %c0_i32_0 = arith.constant 0 : i32
    %c0_i32_1 = arith.constant 0 : i32
    return %c0_i32, %c0_i32_0 : i32, i32
  }
  func.func @transform_3(%arg0: i32, %arg1: i32) -> (i32, i32) {
    %c0_i32 = arith.constant 0 : i32
    %c0_i32_0 = arith.constant 0 : i32
    %c0_i32_1 = arith.constant 0 : i32
    return %c0_i32, %c0_i32_0 : i32, i32
  }
  func.func @transform_4(%arg0: i32, %arg1: i32) -> (i32, i32) {
    %c0_i32 = arith.constant 0 : i32
    %c0_i32_0 = arith.constant 0 : i32
    %c0_i32_1 = arith.constant 0 : i32
    return %c0_i32, %c0_i32_0 : i32, i32
  }
  func.func @transform_5(%arg0: i32, %arg1: i32) -> i32 {
    %c0_i32 = arith.constant 0 : i32
    %c0_i32_0 = arith.constant 0 : i32
    return %c0_i32 : i32
  }
  func.func @transform_6(%arg0: i32, %arg1: i32) -> (i32, i32, i32) {
    %c0_i32 = arith.constant 0 : i32
    %c0_i32_0 = arith.constant 0 : i32
    %c0_i32_1 = arith.constant 0 : i32
    return %arg0, %c0_i32, %c0_i32_0 : i32, i32, i32
  }
}

</mosaic_0001>

<llo_original>
// kernel: tpu_custom_call.1
$region0: #{tpu_custom_call.1}
  #allocation0 [shape = 'u32[]', space=smem, size = 0x4, offset = 0x4, fixed_abs, tag = 'smem constant byte address 0x4 - core index']
  #allocation1 [shape = 'u32[144,128]{1,0:T(1,128)}', space=vmem, size = 0x12000, scoped, tag = 'internal scratch']
  #allocation2 [shape = 'f32[4,16,128]{2,1,0:T(8,128)}', space=vmem, size = 0x8000, scoped, tag = 'scratch operand']
  #allocation3 [shape = 'f32[4,16,256]{2,1,0:T(8,128)}', space=vmem, size = 0x10000, scoped, tag = 'scratch operand']
  #allocation4 [shape = 'f32[1]{0:T(128)S(6)}', space=smem, size = 0x200, scoped, tag = 'scoped memory for tpu_custom_call.1']
  %s0 = inlined_call_operand.hbm [shape: f32[8,16,128], index: 0, kind: input, shape index: {}]
  %s1 = inlined_call_operand.hbm [shape: f32[128,256], index: 1, kind: input, shape index: {}]
  %s2 = inlined_call_operand.vmem [shape: f32[1,256], index: 2, kind: input, shape index: {}]
  %s3 = inlined_call_operand.hbm [shape: f32[128,128], index: 3, kind: input, shape index: {}]
  %s4 = inlined_call_operand.vmem [shape: f32[1,128], index: 4, kind: input, shape index: {}]
  %s5 = inlined_call_operand.<no memory space> [shape: f32[1], index: 5, kind: input, shape index: {}]
  %s6 = inlined_call_operand.hbm [shape: f32[8,16,128], index: 6, kind: output, shape index: {}]
  %s7 = sld [smem:[#allocation0]]
  $region92: #{tpu_custom_call.1} parent=0
    _
  %s9 = ssub.s32 1, %s7
  %s10 = scalar_select 0, %s9, %s7
  %11 = sst [smem:[#allocation4]] %s5
  $region1: #{tpu_custom_call.1} parent=0
    #allocation5 [shape = 'u8[65536]{0}', space=vmem, size = 0x10000, scoped, tag = 'input window, operand 0']
    #allocation6 [shape = 's32[2]{0}', space=sflag, size = 0x8, scoped, tag = 'scoped memory for tpu_custom_call.1']
    #allocation7 [shape = 's32[2]{0}', space=sflag, size = 0x8, scoped, tag = 'scoped memory for tpu_custom_call.1']
    #allocation8 [shape = 'u8[131072]{0}', space=vmem, size = 0x20000, scoped, tag = 'input window, operand 1, single buffered']
    #allocation9 [shape = 's32[1]{0}', space=sflag, size = 0x4, scoped, tag = 'scoped memory for tpu_custom_call.1']
    #allocation10 [shape = 'u8[65536]{0}', space=vmem, size = 0x10000, scoped, tag = 'input window, operand 3, single buffered']
    #allocation11 [shape = 'u8[65536]{0}', space=vmem, size = 0x10000, scoped, tag = 'output window, operand 0']
    %12 = vsyncpa [#allocation6], 0
    %s13 = scalar_lea.sflag [#allocation6], 1
    %14 = vsyncpa %s13, 0
    %15 = vsyncpa [#allocation9], 0
    %16 = vsyncpa [#allocation7], 0
    %s17 = scalar_lea.sflag [#allocation7], 1
    %18 = vsyncpa %s17, 0
    loop: start=0, step=1, limit=4
    $region2: #{tpu_custom_call.1} parent=1 // loop_pre_header
      _
    $region3: #{tpu_custom_call.1} parent=1 // loop_header
      %s20 = sphi 0, %s24
      %p21 = scmp.ge.s32.totalorder %s20, 4
      %s27 = sphi 0, %s39
      %s28 = sphi 0, %s35
      %s29 = sphi 0, %s27
      %s30 = sphi 0, %s28
      %s31 = sphi 0, %s29
      %s32 = sphi 0, %s30
      %s42 = sphi 0, %s44
      %s45 = sphi 0, %s42
      %s46 = sphi 0, %s45
      %s62 = sphi 0, %s46
      %s66 = sphi 0, %s66
      %s68 = sphi 0, %s66
      %s69 = sphi 0, %s68
      %s83 = sphi 0, %s69
      %s87 = sphi 0, %s87
      %s89 = sphi 0, %s87
      %s90 = sphi 0, %s89
      %s104 = sphi 0, %s90
      %s108 = sphi 0, %s108
      %s110 = sphi 0, %s108
      %s111 = sphi 0, %s110
      %s125 = sphi 0, %s111
      %s129 = sphi 0, %s129
      %s131 = sphi 0, %s129
      %s132 = sphi 0, %s131
      %s146 = sphi 0, %s132
      %s150 = sphi 0, %s150
      %s152 = sphi 0, %s150
      %s153 = sphi 0, %s152
      %s167 = sphi 0, %s153
      %s173 = sphi 0, %s175
      %s176 = sphi 0, %s173
      %s177 = sphi 0, %s176
      %s193 = sphi 0, %s177
    $region4: #{tpu_custom_call.1} parent=1 // loop_header_branch
      %23 = sbr.rel (%p21) target = $region8
    $region5: #{tpu_custom_call.1} parent=1 // loop_body
      %s25 = ssub.s32 %s20, 1
      %s26 = ssub.s32 %s20, 2
      %s33 = sadd.s32 1, %s28
      %p34 = scmp.ge.s32.totalorder %s33, 1
      %s35 = scalar_select %p34, 0, %s33
      %s36 = sadd.s32 1, %s27
      %s37 = scalar_select %p34, %s36, %s27
      %p38 = scmp.ge.s32.totalorder %s37, 2
      %s39 = scalar_select %p38, 0, %s37
      %s40 = ssub.s32 %s27, %s39
      %p41 = scmp.eq.s32.totalorder %s40, 0
      %s43 = sadd.s32 %s42, 1
      %s44 = scalar_select %p41, %s42, %s43
      %p47 = pneg %p41
      %p48 = scmp.eq.s32.totalorder %s20, 1
      %p49 = por %p47, %p48
      %p50 = scmp.ne.s32.totalorder %s42, %s45
      %p51 = scmp.eq.s32.totalorder %s20, 0
      %p52 = por %p50, %p51
      %p53 = scmp.ne.s32.totalorder %s42, %s45
      %p54 = scmp.eq.s32.totalorder %s25, 1
      %p55 = por %p53, %p54
      %p56 = scmp.ne.s32.totalorder %s45, %s46
      %p57 = scmp.eq.s32.totalorder %s25, 0
      %p58 = por %p56, %p57
      %p59 = scmp.ne.s32.totalorder %s45, %s46
      %p60 = scmp.eq.s32.totalorder %s26, 1
      %p61 = por %p59, %p60
      %p63 = scmp.ne.s32.totalorder %s46, %s62
      %p64 = scmp.eq.s32.totalorder %s26, 0
      %p65 = por %p63, %p64
      %s67 = sadd.s32 %s66, 1
      %p70 = scmp.eq.s32.totalorder %s20, 1
      %p71 = scmp.ne.s32.totalorder %s66, %s68
      %p72 = scmp.eq.s32.totalorder %s20, 0
      %p73 = por %p71, %p72
      %p74 = scmp.ne.s32.totalorder %s66, %s68
      %p75 = scmp.eq.s32.totalorder %s25, 1
      %p76 = por %p74, %p75
      %p77 = scmp.ne.s32.totalorder %s68, %s69
      %p78 = scmp.eq.s32.totalorder %s25, 0
      %p79 = por %p77, %p78
      %p80 = scmp.ne.s32.totalorder %s68, %s69
      %p81 = scmp.eq.s32.totalorder %s26, 1
      %p82 = por %p80, %p81
      %p84 = scmp.ne.s32.totalorder %s69, %s83
      %p85 = scmp.eq.s32.totalorder %s26, 0
      %p86 = por %p84, %p85
      %s88 = sadd.s32 %s87, 1
      %p91 = scmp.eq.s32.totalorder %s20, 1
      %p92 = scmp.ne.s32.totalorder %s87, %s89
      %p93 = scmp.eq.s32.totalorder %s20, 0
      %p94 = por %p92, %p93
      %p95 = scmp.ne.s32.totalorder %s87, %s89
      %p96 = scmp.eq.s32.totalorder %s25, 1
      %p97 = por %p95, %p96
      %p98 = scmp.ne.s32.totalorder %s89, %s90
      %p99 = scmp.eq.s32.totalorder %s25, 0
      %p100 = por %p98, %p99
      %p101 = scmp.ne.s32.totalorder %s89, %s90
      %p102 = scmp.eq.s32.totalorder %s26, 1
      %p103 = por %p101, %p102
      %p105 = scmp.ne.s32.totalorder %s90, %s104
      %p106 = scmp.eq.s32.totalorder %s26, 0
      %p107 = por %p105, %p106
      %s109 = sadd.s32 %s108, 1
      %p112 = scmp.eq.s32.totalorder %s20, 1
      %p113 = scmp.ne.s32.totalorder %s108, %s110
      %p114 = scmp.eq.s32.totalorder %s20, 0
      %p115 = por %p113, %p114
      %p116 = scmp.ne.s32.totalorder %s108, %s110
      %p117 = scmp.eq.s32.totalorder %s25, 1
      %p118 = por %p116, %p117
      %p119 = scmp.ne.s32.totalorder %s110, %s111
      %p120 = scmp.eq.s32.totalorder %s25, 0
      %p121 = por %p119, %p120
      %p122 = scmp.ne.s32.totalorder %s110, %s111
      %p123 = scmp.eq.s32.totalorder %s26, 1
      %p124 = por %p122, %p123
      %p126 = scmp.ne.s32.totalorder %s111, %s125
      %p127 = scmp.eq.s32.totalorder %s26, 0
      %p128 = por %p126, %p127
      %s130 = sadd.s32 %s129, 1
      %p133 = scmp.eq.s32.totalorder %s20, 1
      %p134 = scmp.ne.s32.totalorder %s129, %s131
      %p135 = scmp.eq.s32.totalorder %s20, 0
      %p136 = por %p134, %p135
      %p137 = scmp.ne.s32.totalorder %s129, %s131
      %p138 = scmp.eq.s32.totalorder %s25, 1
      %p139 = por %p137, %p138
      %p140 = scmp.ne.s32.totalorder %s131, %s132
      %p141 = scmp.eq.s32.totalorder %s25, 0
      %p142 = por %p140, %p141
      %p143 = scmp.ne.s32.totalorder %s131, %s132
      %p144 = scmp.eq.s32.totalorder %s26, 1
      %p145 = por %p143, %p144
      %p147 = scmp.ne.s32.totalorder %s132, %s146
      %p148 = scmp.eq.s32.totalorder %s26, 0
      %p149 = por %p147, %p148
      %s151 = sadd.s32 %s150, 1
      %p154 = scmp.eq.s32.totalorder %s20, 1
      %p155 = scmp.ne.s32.totalorder %s150, %s152
      %p156 = scmp.eq.s32.totalorder %s20, 0
      %p157 = por %p155, %p156
      %p158 = scmp.ne.s32.totalorder %s150, %s152
      %p159 = scmp.eq.s32.totalorder %s25, 1
      %p160 = por %p158, %p159
      %p161 = scmp.ne.s32.totalorder %s152, %s153
      %p162 = scmp.eq.s32.totalorder %s25, 0
      %p163 = por %p161, %p162
      %p164 = scmp.ne.s32.totalorder %s152, %s153
      %p165 = scmp.eq.s32.totalorder %s26, 1
      %p166 = por %p164, %p165
      %p168 = scmp.ne.s32.totalorder %s153, %s167
      %p169 = scmp.eq.s32.totalorder %s26, 0
      %p170 = por %p168, %p169
      %s171 = ssub.s32 %s27, %s39
      %p172 = scmp.eq.s32.totalorder %s171, 0
      %s174 = sadd.s32 %s173, 1
      %s175 = scalar_select %p172, %s173, %s174
      %p178 = pneg %p172
      %p179 = scmp.eq.s32.totalorder %s20, 1
      %p180 = por %p178, %p179
      %p181 = scmp.ne.s32.totalorder %s173, %s176
      %p182 = scmp.eq.s32.totalorder %s20, 0
      %p183 = por %p181, %p182
      %p184 = scmp.ne.s32.totalorder %s173, %s176
      %p185 = scmp.eq.s32.totalorder %s25, 1
      %p186 = por %p184, %p185
      %p187 = scmp.ne.s32.totalorder %s176, %s177
      %p188 = scmp.eq.s32.totalorder %s25, 0
      %p189 = por %p187, %p188
      %p190 = scmp.ne.s32.totalorder %s176, %s177
      %p191 = scmp.eq.s32.totalorder %s26, 1
      %p192 = por %p190, %p191
      %p194 = scmp.ne.s32.totalorder %s177, %s193
      %p195 = scmp.eq.s32.totalorder %s26, 0
      %p196 = por %p194, %p195
      %p197 = scmp.le.s32.totalorder 1, %s20
      %p198 = scmp.lt.s32.totalorder %s20, 3
      %p199 = pnand %p197, %p198
      %p200 = pneg %p199
      // Predicated region
      $region9: #{tpu_custom_call.1} parent=5 // pred_check
        _
      $region10: #{tpu_custom_call.1} parent=5 // pred_check_branch
        %202 = sbr.rel (%p199) target = $region12
      $region11: #{tpu_custom_call.1} parent=5 // pred_region
        %s203 = ssub.s32 %s20, 1
        // Predicated region
        $region13: #{tpu_custom_call.1} parent=11 // pred_check
          %p204 = pneg %p79
        $region14: #{tpu_custom_call.1} parent=11 // pred_check_branch
          %206 = sbr.rel (%p204) target = $region16
        $region15: #{tpu_custom_call.1} parent=11 // pred_region
          %s208 = ssub.s32 4096, 4096
          %209 = vsyncadd [#allocation9], %s208
          %s210 = sshll.u32 [#allocation8], 4
          %s211 = int_to_ptr.vmem [resolvable:$true] %s210
          %216 = dma.hbm_to_vmem [thread:$0]  %s1, 4096, %s211, [#allocation9], 256, 256, 16
        $region16: #{tpu_custom_call.1} parent=11 // pred_fallthru
          _
        // Predicated region
        $region17: #{tpu_custom_call.1} parent=11 // pred_check
          %p217 = pneg %p100
        $region18: #{tpu_custom_call.1} parent=11 // pred_check_branch
          %219 = sbr.rel (%p217) target = $region20
        $region19: #{tpu_custom_call.1} parent=11 // pred_region
          _
        $region20: #{tpu_custom_call.1} parent=11 // pred_fallthru
          _
        // Predicated region
        $region21: #{tpu_custom_call.1} parent=11 // pred_check
          %p220 = pneg %p121
        $region22: #{tpu_custom_call.1} parent=11 // pred_check_branch
          %222 = sbr.rel (%p220) target = $region24
        $region23: #{tpu_custom_call.1} parent=11 // pred_region
          %s224 = ssub.s32 2048, 2048
          %225 = vsyncadd [#allocation9], %s224
          %s226 = sshll.u32 [#allocation10], 4
          %s227 = int_to_ptr.vmem [resolvable:$true] %s226
          %232 = dma.hbm_to_vmem [thread:$0]  %s3, 2048, %s227, [#allocation9], 128, 128, 8
        $region24: #{tpu_custom_call.1} parent=11 // pred_fallthru
          _
        // Predicated region
        $region25: #{tpu_custom_call.1} parent=11 // pred_check
          %p233 = pneg %p142
        $region26: #{tpu_custom_call.1} parent=11 // pred_check_branch
          %235 = sbr.rel (%p233) target = $region28
        $region27: #{tpu_custom_call.1} parent=11 // pred_region
          _
        $region28: #{tpu_custom_call.1} parent=11 // pred_fallthru
          _
        // Predicated region
        $region29: #{tpu_custom_call.1} parent=11 // pred_check
          %p236 = pneg %p163
        $region30: #{tpu_custom_call.1} parent=11 // pred_check_branch
          %238 = sbr.rel (%p236) target = $region32
        $region31: #{tpu_custom_call.1} parent=11 // pred_region
          _
        $region32: #{tpu_custom_call.1} parent=11 // pred_fallthru
          _
      $region12: #{tpu_custom_call.1} parent=5 // pred_fallthru
        _
      %p239 = scmp.lt.s32.totalorder %s20, 2
      // Predicated region
      $region33: #{tpu_custom_call.1} parent=5 // pred_check
        %p240 = pneg %p239
      $region34: #{tpu_custom_call.1} parent=5 // pred_check_branch
        %242 = sbr.rel (%p240) target = $region36
      $region35: #{tpu_custom_call.1} parent=5 // pred_region
        // Predicated region
        $region37: #{tpu_custom_call.1} parent=35 // pred_check
          %p243 = pneg %p52
        $region38: #{tpu_custom_call.1} parent=35 // pred_check_branch
          %245 = sbr.rel (%p243) target = $region40
        $region39: #{tpu_custom_call.1} parent=35 // pred_region
          %s246 = sand.u32 %s42, 1
          %s247 = scalar_lea.sflag [#allocation6], %s246
          %s248 = sand.u32 %s42, 1
          %s249 = smul.addr %s248, 64
          %s250 = scalar_lea.vmem [#allocation5], %s249
          %s251 = smul.u32 4, %s27
          %s253 = ssub.s32 1024, 1024
          %254 = vsyncadd %s247, %s253
          %s255 = smul.addr %s251, 2
          %s256 = smul.addr %s255, 128
          %s257 = scalar_lea.hbm %s0, %s256
          %s258 = sshll.u32 %s250, 4
          %s259 = int_to_ptr.vmem [resolvable:$true] %s258
          %264 = dma.hbm_to_vmem [thread:$0]  %s257, 1024, %s259, %s247, 128, 128, 8
        $region40: #{tpu_custom_call.1} parent=35 // pred_fallthru
          _
      $region36: #{tpu_custom_call.1} parent=5 // pred_fallthru
        _
      %p265 = scmp.le.s32.totalorder 1, %s20
      %p266 = scmp.lt.s32.totalorder %s20, 3
      %p267 = pnand %p265, %p266
      %p268 = pneg %p267
      // Predicated region
      $region41: #{tpu_custom_call.1} parent=5 // pred_check
        _
      $region42: #{tpu_custom_call.1} parent=5 // pred_check_branch
        %270 = sbr.rel (%p267) target = $region44
      $region43: #{tpu_custom_call.1} parent=5 // pred_region
        %s271 = ssub.s32 %s20, 1
        %s272 = sand.u32 %s45, 1
        %s273 = scalar_lea.sflag [#allocation6], %s272
        %s274 = sand.u32 %s45, 1
        %s275 = smul.addr %s274, 64
        %s276 = scalar_lea.vmem [#allocation5], %s275
        // Predicated region
        $region45: #{tpu_custom_call.1} parent=43 // pred_check
          %p277 = pneg %p58
        $region46: #{tpu_custom_call.1} parent=43 // pred_check_branch
          %279 = sbr.rel (%p277) target = $region48
        $region47: #{tpu_custom_call.1} parent=43 // pred_region
          %280 = dma.done %s273, 1024
        $region48: #{tpu_custom_call.1} parent=43 // pred_fallthru
          _
        // Predicated region
        $region49: #{tpu_custom_call.1} parent=43 // pred_check
          %p281 = pneg %p79
        $region50: #{tpu_custom_call.1} parent=43 // pred_check_branch
          %283 = sbr.rel (%p281) target = $region52
        $region51: #{tpu_custom_call.1} parent=43 // pred_region
          %284 = dma.done [#allocation9], 4096
        $region52: #{tpu_custom_call.1} parent=43 // pred_fallthru
          _
        // Predicated region
        $region53: #{tpu_custom_call.1} parent=43 // pred_check
          %p285 = pneg %p121
        $region54: #{tpu_custom_call.1} parent=43 // pred_check_branch
          %287 = sbr.rel (%p285) target = $region56
        $region55: #{tpu_custom_call.1} parent=43 // pred_region
          %288 = dma.done [#allocation9], 2048
        $region56: #{tpu_custom_call.1} parent=43 // pred_fallthru
          _
        %s289 = sand.u32 %s45, 1
        %s290 = scalar_lea.sflag [#allocation6], %s289
        %s291 = sand.u32 %s45, 1
        %s292 = smul.addr %s291, 64
        %s293 = scalar_lea.vmem [#allocation5], %s292
        %p294 = pneg %p58
        %p295 = pneg %p55
        %p296 = pneg %p79
        %p297 = pneg %p76
        %p298 = pneg %p100
        %p299 = pneg %p97
        %p300 = pneg %p121
        %p301 = pneg %p118
        %p302 = pneg %p142
        %p303 = pneg %p139
        %p304 = pneg %p163
        %p305 = pneg %p160
        %p306 = pneg %p189
        %p307 = pneg %p186
        %s308 = sand.u32 %s176, 1
        %s309 = scalar_lea.sflag [#allocation7], %s308
        %s310 = sand.u32 %s176, 1
        %s311 = smul.addr %s310, 64
        %s312 = scalar_lea.vmem [#allocation11], %s311
        %s313 = smul.u32 4, %s29
        %s314 = smul.u32 4, %s29
        %p315 = scmp.eq.s32.totalorder %s30, 0
        // Predicated region
        $region57: #{tpu_custom_call.1} parent=43 // pred_check
          %p316 = pneg %p315
        $region58: #{tpu_custom_call.1} parent=43 // pred_check_branch
          %318 = sbr.rel (%p316) target = $region60
        $region59: #{tpu_custom_call.1} parent=43 // pred_region
          %v319 = vld [vmem:[%s276] sm:$0xff]
          %v320 = vld [vmem:[%s276 + $0x8] sm:$0xff]
          %v321 = vld [vmem:[%s276 + $0x10] sm:$0xff]
          %v322 = vld [vmem:[%s276 + $0x18] sm:$0xff]
          %v323 = vld [vmem:[%s276 + $0x20] sm:$0xff]
          %v324 = vld [vmem:[%s276 + $0x28] sm:$0xff]
          %v325 = vld [vmem:[%s276 + $0x30] sm:$0xff]
          %v326 = vld [vmem:[%s276 + $0x38] sm:$0xff]
          %v327 = vld [vmem:[#allocation10] sm:$0xff]
          %v328 = vld [vmem:[#allocation10 + $0x8] sm:$0xff]
          %v329 = vld [vmem:[#allocation10 + $0x10] sm:$0xff]
          %v330 = vld [vmem:[#allocation10 + $0x18] sm:$0xff]
          %v331 = vld [vmem:[#allocation10 + $0x20] sm:$0xff]
          %v332 = vld [vmem:[#allocation10 + $0x28] sm:$0xff]
          %v333 = vld [vmem:[#allocation10 + $0x30] sm:$0xff]
          %v334 = vld [vmem:[#allocation10 + $0x38] sm:$0xff]
          %v335 = vld [vmem:[#allocation10 + $0x40] sm:$0xff]
          %v336 = vld [vmem:[#allocation10 + $0x48] sm:$0xff]
          %v337 = vld [vmem:[#allocation10 + $0x50] sm:$0xff]
          %v338 = vld [vmem:[#allocation10 + $0x58] sm:$0xff]
          %v339 = vld [vmem:[#allocation10 + $0x60] sm:$0xff]
          %v340 = vld [vmem:[#allocation10 + $0x68] sm:$0xff]
          %v341 = vld [vmem:[#allocation10 + $0x70] sm:$0xff]
          %v342 = vld [vmem:[#allocation10 + $0x78] sm:$0xff]
          %v343 = vld [vmem:[%s4] sm:$0x1]
          %v345 = vlaneseq
          %v346 = vshrl.u32 %v345, 7
          %v347 = vsub.s32 0, %v346
          %v348 = vrot.slane %v343, %v347
          %350 = vmatprep.subr.mxu0 0.0
          %351 = vmatpush1.msra.mxu0 %v342
          %352 = vmatprep.subr.mxu0 0.0
          %353 = vmatpush1.msra.mxu0 %v341
          %354 = vmatprep.subr.mxu0 0.0
          %355 = vmatpush1.msra.mxu0 %v340
          %356 = vmatprep.subr.mxu0 0.0
          %357 = vmatpush1.msra.mxu0 %v339
          %358 = vmatprep.subr.mxu0 0.0
          %359 = vmatpush1.msra.mxu0 %v338
          %360 = vmatprep.subr.mxu0 0.0
          %361 = vmatpush1.msra.mxu0 %v337
          %362 = vmatprep.subr.mxu0 0.0
          %363 = vmatpush1.msra.mxu0 %v336
          %364 = vmatprep.subr.mxu0 0.0
          %365 = vmatpush1.msra.mxu0 %v335
          %366 = vmatprep.subr.mxu0 0.0
          %367 = vmatpush1.msra.mxu0 %v334
          %368 = vmatprep.subr.mxu0 0.0
          %369 = vmatpush1.msra.mxu0 %v333
          %370 = vmatprep.subr.mxu0 0.0
          %371 = vmatpush1.msra.mxu0 %v332
          %372 = vmatprep.subr.mxu0 0.0
          %373 = vmatpush1.msra.mxu0 %v331
          %374 = vmatprep.subr.mxu0 0.0
          %375 = vmatpush1.msra.mxu0 %v330
          %376 = vmatprep.subr.mxu0 0.0
          %377 = vmatpush1.msra.mxu0 %v329
          %378 = vmatprep.subr.mxu0 0.0
          %379 = vmatpush1.msra.mxu0 %v328
          %380 = vmatprep.subr.mxu0 0.0
          %381 = vmatpush1.msra.mxu0 %v327
          %382 = vmatprep.subr.mxu0 0.0
          %383 = vmatpush2.msra.mxu0 0.0
          %384 = vmatprep.subr.mxu0 0.0
          %385 = vmatpush2.msra.mxu0 0.0
          %386 = vmatprep.subr.mxu0 0.0
          %387 = vmatpush2.msra.mxu0 0.0
          %388 = vmatprep.subr.mxu0 0.0
          %389 = vmatpush2.msra.mxu0 0.0
          %390 = vmatprep.subr.mxu0 0.0
          %391 = vmatpush2.msra.mxu0 0.0
          %392 = vmatprep.subr.mxu0 0.0
          %393 = vmatpush2.msra.mxu0 0.0
          %394 = vmatprep.subr.mxu0 0.0
          %395 = vmatpush2.msra.mxu0 0.0
          %396 = vmatprep.subr.mxu0 0.0
          %397 = vmatpush2.msra.mxu0 0.0
          %398 = vmatprep.subr.mxu0 0.0
          %399 = vmatpush2.msra.mxu0 0.0
          %400 = vmatprep.subr.mxu0 0.0
          %401 = vmatpush2.msra.mxu0 0.0
          %402 = vmatprep.subr.mxu0 0.0
          %403 = vmatpush2.msra.mxu0 0.0
          %404 = vmatprep.subr.mxu0 0.0
          %405 = vmatpush2.msra.mxu0 0.0
          %406 = vmatprep.subr.mxu0 0.0
          %407 = vmatpush2.msra.mxu0 0.0
          %408 = vmatprep.subr.mxu0 0.0
          %409 = vmatpush2.msra.mxu0 0.0
          %410 = vmatprep.subr.mxu0 0.0
          %411 = vmatpush2.msra.mxu0 0.0
          %412 = vmatprep.subr.mxu0 0.0
          %413 = vmatpush2.msra.mxu0 0.0
          %414 = vmatprep.mubr.f32.mxu0 0.0
          %415 = vmatmul.mubr.f32.gmra.mxu0 %v319
          %v416 = vpop.f32.mrf.mxu0
          %v417 = vadd.f32 %v348, %v416
          %v418 = vpop.f32.mrf.mxu0
          %419 = vmatprep.mubr.f32.mxu0 0.0
          %420 = vmatmul.mubr.f32.gmra.mxu0 %v320
          %v421 = vpop.f32.mrf.mxu0
          %v422 = vadd.f32 %v348, %v421
          %v423 = vpop.f32.mrf.mxu0
          %424 = vmatprep.mubr.f32.mxu0 0.0
          %425 = vmatmul.mubr.f32.gmra.mxu0 %v321
          %v426 = vpop.f32.mrf.mxu0
          %v427 = vadd.f32 %v348, %v426
          %v428 = vpop.f32.mrf.mxu0
          %429 = vmatprep.mubr.f32.mxu0 0.0
          %430 = vmatmul.mubr.f32.gmra.mxu0 %v322
          %v431 = vpop.f32.mrf.mxu0
          %v432 = vadd.f32 %v348, %v431
          %v433 = vpop.f32.mrf.mxu0
          %434 = vmatprep.mubr.f32.mxu0 0.0
          %435 = vmatmul.mubr.f32.gmra.mxu0 %v323
          %v436 = vpop.f32.mrf.mxu0
          %v437 = vadd.f32 %v348, %v436
          %v438 = vpop.f32.mrf.mxu0
          %439 = vmatprep.mubr.f32.mxu0 0.0
          %440 = vmatmul.mubr.f32.gmra.mxu0 %v324
          %v441 = vpop.f32.mrf.mxu0
          %v442 = vadd.f32 %v348, %v441
          %v443 = vpop.f32.mrf.mxu0
          %444 = vmatprep.mubr.f32.mxu0 0.0
          %445 = vmatmul.mubr.f32.gmra.mxu0 %v325
          %v446 = vpop.f32.mrf.mxu0
          %v447 = vadd.f32 %v348, %v446
          %v448 = vpop.f32.mrf.mxu0
          %449 = vmatprep.mubr.f32.mxu0 0.0
          %450 = vmatmul.mubr.f32.gmra.mxu0 %v326
          %v451 = vpop.f32.mrf.mxu0
          %v452 = vadd.f32 %v348, %v451
          %v453 = vpop.f32.mrf.mxu0
          %454 = vdwg.mxu0
          %455 = vst [vmem:[#allocation2] sm:$0xff] %v417
          %456 = vst [vmem:[#allocation2 + $0x8] sm:$0xff] %v422
          %457 = vst [vmem:[#allocation2 + $0x10] sm:$0xff] %v427
          %458 = vst [vmem:[#allocation2 + $0x18] sm:$0xff] %v432
          %459 = vst [vmem:[#allocation2 + $0x20] sm:$0xff] %v437
          %460 = vst [vmem:[#allocation2 + $0x28] sm:$0xff] %v442
          %461 = vst [vmem:[#allocation2 + $0x30] sm:$0xff] %v447
          %462 = vst [vmem:[#allocation2 + $0x38] sm:$0xff] %v452
        $region60: #{tpu_custom_call.1} parent=43 // pred_fallthru
          _
        %s463 = smul.u32 %s30, 16
        %s464 = scalar_lea.vmem %s276, %s463 [#allocation5]
        %v465 = vld [vmem:[%s464] sm:$0xff]
        %v466 = vld [vmem:[%s464 + $0x8] sm:$0xff]
        %v467 = vld [vmem:[%s464 + $0x10] sm:$0xff]
        %v468 = vld [vmem:[%s464 + $0x18] sm:$0xff]
        %v469 = vld [vmem:[%s464 + $0x20] sm:$0xff]
        %v470 = vld [vmem:[%s464 + $0x28] sm:$0xff]
        %v471 = vld [vmem:[%s464 + $0x30] sm:$0xff]
        %v472 = vld [vmem:[%s464 + $0x38] sm:$0xff]
        %v473 = vld [vmem:[#allocation8] sm:$0xff]
        %v474 = vld [vmem:[#allocation8 + $0x8] sm:$0xff]
        %v475 = vld [vmem:[#allocation8 + $0x10] sm:$0xff]
        %v476 = vld [vmem:[#allocation8 + $0x18] sm:$0xff]
        %v477 = vld [vmem:[#allocation8 + $0x20] sm:$0xff]
        %v478 = vld [vmem:[#allocation8 + $0x28] sm:$0xff]
        %v479 = vld [vmem:[#allocation8 + $0x30] sm:$0xff]
        %v480 = vld [vmem:[#allocation8 + $0x38] sm:$0xff]
        %v481 = vld [vmem:[#allocation8 + $0x40] sm:$0xff]
        %v482 = vld [vmem:[#allocation8 + $0x48] sm:$0xff]
        %v483 = vld [vmem:[#allocation8 + $0x50] sm:$0xff]
        %v484 = vld [vmem:[#allocation8 + $0x58] sm:$0xff]
        %v485 = vld [vmem:[#allocation8 + $0x60] sm:$0xff]
        %v486 = vld [vmem:[#allocation8 + $0x68] sm:$0xff]
        %v487 = vld [vmem:[#allocation8 + $0x70] sm:$0xff]
        %v488 = vld [vmem:[#allocation8 + $0x78] sm:$0xff]
        %v489 = vld [vmem:[#allocation8 + $0x80] sm:$0xff]
        %v490 = vld [vmem:[#allocation8 + $0x88] sm:$0xff]
        %v491 = vld [vmem:[#allocation8 + $0x90] sm:$0xff]
        %v492 = vld [vmem:[#allocation8 + $0x98] sm:$0xff]
        %v493 = vld [vmem:[#allocation8 + $0xa0] sm:$0xff]
        %v494 = vld [vmem:[#allocation8 + $0xa8] sm:$0xff]
        %v495 = vld [vmem:[#allocation8 + $0xb0] sm:$0xff]
        %v496 = vld [vmem:[#allocation8 + $0xb8] sm:$0xff]
        %v497 = vld [vmem:[#allocation8 + $0xc0] sm:$0xff]
        %v498 = vld [vmem:[#allocation8 + $0xc8] sm:$0xff]
        %v499 = vld [vmem:[#allocation8 + $0xd0] sm:$0xff]
        %v500 = vld [vmem:[#allocation8 + $0xd8] sm:$0xff]
        %v501 = vld [vmem:[#allocation8 + $0xe0] sm:$0xff]
        %v502 = vld [vmem:[#allocation8 + $0xe8] sm:$0xff]
        %v503 = vld [vmem:[#allocation8 + $0xf0] sm:$0xff]
        %v504 = vld [vmem:[#allocation8 + $0xf8] sm:$0xff]
        %v505 = vld [vmem:[%s2] sm:$0x3]
        %v507 = vlaneseq
        %v508 = vshrl.u32 %v507, 7
        %v509 = vsub.s32 0, %v508
        %v510 = vrot.slane %v505, %v509
        %v511 = vlaneseq
        %v512 = vshrl.u32 %v511, 7
        %v513 = vsub.s32 1, %v512
        %v514 = vrot.slane %v505, %v513
        %517 = vmatprep.subr.mxu0 %v504
        %518 = vmatpush1.msra.mxu0 %v503
        %519 = vmatprep.subr.mxu0 %v502
        %520 = vmatpush1.msra.mxu0 %v501
        %521 = vmatprep.subr.mxu0 %v500
        %522 = vmatpush1.msra.mxu0 %v499
        %523 = vmatprep.subr.mxu0 %v498
        %524 = vmatpush1.msra.mxu0 %v497
        %525 = vmatprep.subr.mxu0 %v496
        %526 = vmatpush1.msra.mxu0 %v495
        %527 = vmatprep.subr.mxu0 %v494
        %528 = vmatpush1.msra.mxu0 %v493
        %529 = vmatprep.subr.mxu0 %v492
        %530 = vmatpush1.msra.mxu0 %v491
        %531 = vmatprep.subr.mxu0 %v490
        %532 = vmatpush1.msra.mxu0 %v489
        %533 = vmatprep.subr.mxu0 %v488
        %534 = vmatpush1.msra.mxu0 %v487
        %535 = vmatprep.subr.mxu0 %v486
        %536 = vmatpush1.msra.mxu0 %v485
        %537 = vmatprep.subr.mxu0 %v484
        %538 = vmatpush1.msra.mxu0 %v483
        %539 = vmatprep.subr.mxu0 %v482
        %540 = vmatpush1.msra.mxu0 %v481
        %541 = vmatprep.subr.mxu0 %v480
        %542 = vmatpush1.msra.mxu0 %v479
        %543 = vmatprep.subr.mxu0 %v478
        %544 = vmatpush1.msra.mxu0 %v477
        %545 = vmatprep.subr.mxu0 %v476
        %546 = vmatpush1.msra.mxu0 %v475
        %547 = vmatprep.subr.mxu0 %v474
        %548 = vmatpush1.msra.mxu0 %v473
        %549 = vmatprep.subr.mxu0 0.0
        %550 = vmatpush2.msra.mxu0 0.0
        %551 = vmatprep.subr.mxu0 0.0
        %552 = vmatpush2.msra.mxu0 0.0
        %553 = vmatprep.subr.mxu0 0.0
        %554 = vmatpush2.msra.mxu0 0.0
        %555 = vmatprep.subr.mxu0 0.0
        %556 = vmatpush2.msra.mxu0 0.0
        %557 = vmatprep.subr.mxu0 0.0
        %558 = vmatpush2.msra.mxu0 0.0
        %559 = vmatprep.subr.mxu0 0.0
        %560 = vmatpush2.msra.mxu0 0.0
        %561 = vmatprep.subr.mxu0 0.0
        %562 = vmatpush2.msra.mxu0 0.0
        %563 = vmatprep.subr.mxu0 0.0
        %564 = vmatpush2.msra.mxu0 0.0
        %565 = vmatprep.subr.mxu0 0.0
        %566 = vmatpush2.msra.mxu0 0.0
        %567 = vmatprep.subr.mxu0 0.0
        %568 = vmatpush2.msra.mxu0 0.0
        %569 = vmatprep.subr.mxu0 0.0
        %570 = vmatpush2.msra.mxu0 0.0
        %571 = vmatprep.subr.mxu0 0.0
        %572 = vmatpush2.msra.mxu0 0.0
        %573 = vmatprep.subr.mxu0 0.0
        %574 = vmatpush2.msra.mxu0 0.0
        %575 = vmatprep.subr.mxu0 0.0
        %576 = vmatpush2.msra.mxu0 0.0
        %577 = vmatprep.subr.mxu0 0.0
        %578 = vmatpush2.msra.mxu0 0.0
        %579 = vmatprep.subr.mxu0 0.0
        %580 = vmatpush2.msra.mxu0 0.0
        %581 = vmatprep.mubr.f32.mxu0 0.0
        %582 = vmatmul.mubr.f32.gmra.mxu0 %v465
        %v583 = vpop.f32.mrf.mxu0
        %v584 = vadd.f32 %v510, %v583
        %v585 = vpop.f32.mrf.mxu0
        %v586 = vadd.f32 %v514, %v585
        %587 = vmatprep.mubr.f32.mxu0 0.0
        %588 = vmatmul.mubr.f32.gmra.mxu0 %v466
        %v589 = vpop.f32.mrf.mxu0
        %v590 = vadd.f32 %v510, %v589
        %v591 = vpop.f32.mrf.mxu0
        %v592 = vadd.f32 %v514, %v591
        %593 = vmatprep.mubr.f32.mxu0 0.0
        %594 = vmatmul.mubr.f32.gmra.mxu0 %v467
        %v595 = vpop.f32.mrf.mxu0
        %v596 = vadd.f32 %v510, %v595
        %v597 = vpop.f32.mrf.mxu0
        %v598 = vadd.f32 %v514, %v597
        %599 = vmatprep.mubr.f32.mxu0 0.0
        %600 = vmatmul.mubr.f32.gmra.mxu0 %v468
        %v601 = vpop.f32.mrf.mxu0
        %v602 = vadd.f32 %v510, %v601
        %v603 = vpop.f32.mrf.mxu0
        %v604 = vadd.f32 %v514, %v603
        %605 = vmatprep.mubr.f32.mxu0 0.0
        %606 = vmatmul.mubr.f32.gmra.mxu0 %v469
        %v607 = vpop.f32.mrf.mxu0
        %v608 = vadd.f32 %v510, %v607
        %v609 = vpop.f32.mrf.mxu0
        %v610 = vadd.f32 %v514, %v609
        %611 = vmatprep.mubr.f32.mxu0 0.0
        %612 = vmatmul.mubr.f32.gmra.mxu0 %v470
        %v613 = vpop.f32.mrf.mxu0
        %v614 = vadd.f32 %v510, %v613
        %v615 = vpop.f32.mrf.mxu0
        %v616 = vadd.f32 %v514, %v615
        %617 = vmatprep.mubr.f32.mxu0 0.0
        %618 = vmatmul.mubr.f32.gmra.mxu0 %v471
        %v619 = vpop.f32.mrf.mxu0
        %v620 = vadd.f32 %v510, %v619
        %v621 = vpop.f32.mrf.mxu0
        %v622 = vadd.f32 %v514, %v621
        %623 = vmatprep.mubr.f32.mxu0 0.0
        %624 = vmatmul.mubr.f32.gmra.mxu0 %v472
        %v625 = vpop.f32.mrf.mxu0
        %v626 = vadd.f32 %v510, %v625
        %v627 = vpop.f32.mrf.mxu0
        %v628 = vadd.f32 %v514, %v627
        %629 = vdwg.mxu0
        %630 = vst [vmem:[#allocation3] sm:$0xff] %v584
        %631 = vst [vmem:[#allocation3 + $0x8] sm:$0xff] %v586
        %632 = vst [vmem:[#allocation3 + $0x10] sm:$0xff] %v590
        %633 = vst [vmem:[#allocation3 + $0x18] sm:$0xff] %v592
        %634 = vst [vmem:[#allocation3 + $0x20] sm:$0xff] %v596
        %635 = vst [vmem:[#allocation3 + $0x28] sm:$0xff] %v598
        %636 = vst [vmem:[#allocation3 + $0x30] sm:$0xff] %v602
        %637 = vst [vmem:[#allocation3 + $0x38] sm:$0xff] %v604
        %638 = vst [vmem:[#allocation3 + $0x40] sm:$0xff] %v608
        %639 = vst [vmem:[#allocation3 + $0x48] sm:$0xff] %v610
        %640 = vst [vmem:[#allocation3 + $0x50] sm:$0xff] %v614
        %641 = vst [vmem:[#allocation3 + $0x58] sm:$0xff] %v616
        %642 = vst [vmem:[#allocation3 + $0x60] sm:$0xff] %v620
        %643 = vst [vmem:[#allocation3 + $0x68] sm:$0xff] %v622
        %644 = vst [vmem:[#allocation3 + $0x70] sm:$0xff] %v626
        %645 = vst [vmem:[#allocation3 + $0x78] sm:$0xff] %v628
        loop: start=0, step=1, limit=4
        $region61: #{tpu_custom_call.1} parent=43 // loop_pre_header
          _
        $region62: #{tpu_custom_call.1} parent=43 // loop_header
          %s647 = sphi 0, %s651
          %p648 = scmp.ge.s32.totalorder %s647, 4
        $region63: #{tpu_custom_call.1} parent=43 // loop_header_branch
          %650 = sbr.rel (%p648) target = $region67
        $region64: #{tpu_custom_call.1} parent=43 // loop_body
          %s652 = smul.u32 %s647, 4
          %s653 = smul.addr %s652, 8
          %s654 = scalar_lea.vmem [#allocation3], %s653
          %v655 = vld [vmem:[%s654] sm:$0xff]
          %v656 = vld [vmem:[%s654 + $0x8] sm:$0xff]
          %v657 = vld [vmem:[%s654 + $0x10] sm:$0xff]
          %v658 = vld [vmem:[%s654 + $0x18] sm:$0xff]
          %s659 = smul.u32 %s647, 16
          %s660 = scalar_lea.vmem [#allocation2], %s659
          %v661 = vld [vmem:[%s660] sm:$0xff]
          %v662 = vld [vmem:[%s660 + $0x8] sm:$0xff]
          %663 = vmatprep.subr.mxu0 0.0
          %664 = vmatpush1.xpose.msra.mxu0 0.0
          %665 = vmatprep.subr.mxu0 0.0
          %666 = vmatpush1.xpose.msra.mxu0 0.0
          %667 = vmatprep.subr.mxu0 0.0
          %668 = vmatpush1.xpose.msra.mxu0 0.0
          %669 = vmatprep.subr.mxu0 0.0
          %670 = vmatpush1.xpose.msra.mxu0 0.0
          %671 = vmatprep.subr.mxu0 0.0
          %672 = vmatpush1.xpose.msra.mxu0 0.0
          %673 = vmatprep.subr.mxu0 0.0
          %674 = vmatpush1.xpose.msra.mxu0 0.0
          %675 = vmatprep.subr.mxu0 0.0
          %676 = vmatpush1.xpose.msra.mxu0 0.0
          %677 = vmatprep.subr.mxu0 0.0
          %678 = vmatpush1.xpose.msra.mxu0 0.0
          %679 = vmatprep.subr.mxu0 0.0
          %680 = vmatpush1.xpose.msra.mxu0 0.0
          %681 = vmatprep.subr.mxu0 0.0
          %682 = vmatpush1.xpose.msra.mxu0 0.0
          %683 = vmatprep.subr.mxu0 0.0
          %684 = vmatpush1.xpose.msra.mxu0 0.0
          %685 = vmatprep.subr.mxu0 0.0
          %686 = vmatpush1.xpose.msra.mxu0 0.0
          %687 = vmatprep.subr.mxu0 0.0
          %688 = vmatpush1.xpose.msra.mxu0 0.0
          %689 = vmatprep.subr.mxu0 0.0
          %690 = vmatpush1.xpose.msra.mxu0 0.0
          %691 = vmatprep.subr.mxu0 0.0
          %692 = vmatpush1.xpose.msra.mxu0 %v662
          %693 = vmatprep.subr.mxu0 0.0
          %694 = vmatpush1.xpose.msra.mxu0 %v661
          %695 = vmatprep.subr.mxu0 0.0
          %696 = vmatpush2.xpose.msra.mxu0 0.0
          %697 = vmatprep.subr.mxu0 0.0
          %698 = vmatpush2.xpose.msra.mxu0 0.0
          %699 = vmatprep.subr.mxu0 0.0
          %700 = vmatpush2.xpose.msra.mxu0 0.0
          %701 = vmatprep.subr.mxu0 0.0
          %702 = vmatpush2.xpose.msra.mxu0 0.0
          %703 = vmatprep.subr.mxu0 0.0
          %704 = vmatpush2.xpose.msra.mxu0 0.0
          %705 = vmatprep.subr.mxu0 0.0
          %706 = vmatpush2.xpose.msra.mxu0 0.0
          %707 = vmatprep.subr.mxu0 0.0
          %708 = vmatpush2.xpose.msra.mxu0 0.0
          %709 = vmatprep.subr.mxu0 0.0
          %710 = vmatpush2.xpose.msra.mxu0 0.0
          %711 = vmatprep.subr.mxu0 0.0
          %712 = vmatpush2.xpose.msra.mxu0 0.0
          %713 = vmatprep.subr.mxu0 0.0
          %714 = vmatpush2.xpose.msra.mxu0 0.0
          %715 = vmatprep.subr.mxu0 0.0
          %716 = vmatpush2.xpose.msra.mxu0 0.0
          %717 = vmatprep.subr.mxu0 0.0
          %718 = vmatpush2.xpose.msra.mxu0 0.0
          %719 = vmatprep.subr.mxu0 0.0
          %720 = vmatpush2.xpose.msra.mxu0 0.0
          %721 = vmatprep.subr.mxu0 0.0
          %722 = vmatpush2.xpose.msra.mxu0 0.0
          %723 = vmatprep.subr.mxu0 0.0
          %724 = vmatpush2.xpose.msra.mxu0 0.0
          %725 = vmatprep.subr.mxu0 0.0
          %726 = vmatpush2.xpose.msra.mxu0 0.0
          %727 = vmatprep.mubr.f32.mxu0 0.0
          %728 = vmatmul.mubr.f32.gmra.mxu0 %v656
          %v729 = vpop.f32.mrf.mxu0
          %v730 = vadd.f32 0.0, %v729
          %v731 = vpop.f32.mrf.mxu0
          %732 = vmatprep.mubr.f32.mxu0 0.0
          %733 = vmatmul.mubr.f32.gmra.mxu0 %v658
          %v734 = vpop.f32.mrf.mxu0
          %v735 = vadd.f32 0.0, %v734
          %v736 = vpop.f32.mrf.mxu0
          %737 = vdwg.mxu0
          %vm738 = vcmask 130048
          %v739 = vsel %vm738, %v730, -inf
          %740 = vmax.xlane.f32.xlu0 %v739
          %v741 = vpop.xlane.xlu0 %740
          %v742 = vsel %vm738, %v735, -inf
          %743 = vmax.xlane.f32.xlu0 %v742
          %v744 = vpop.xlane.xlu0 %743
          %v745 = vsub.f32 %v730, %v741
          %v746 = vsub.f32 %v735, %v744
          %v747 = vmul.f32 %v745, 1.442695
          %v748 = vpow.pop %v747
          %v749 = vmul.f32 %v746, 1.442695
          %v750 = vpow.pop %v749
          %v751 = vsel %vm738, %v748, 0.0
          %752 = vadd.xlane.f32.xlu0 %v751
          %v753 = vpop.xlane.xlu0 %752
          %v754 = vsel %vm738, %v750, 0.0
          %755 = vadd.xlane.f32.xlu0 %v754
          %v756 = vpop.xlane.xlu0 %755
          %v757 = vrcp.pop %v753
          %v758 = vmul.f32 1.0, %v757
          %v759 = vrcp.pop %v756
          %v760 = vmul.f32 1.0, %v759
          %v761 = vmul.f32 %v655, %v758
          %v762 = vmul.f32 %v657, %v760
          %763 = vxpose.xlu0.b32.start [1/16] %v748, 128
          %764 = vxpose.xlu0.b32.cont [2/16] %v750, 128
          %765 = vxpose.xlu0.b32.cont [3/16] 0.0, 128
          %766 = vxpose.xlu0.b32.cont [4/16] 0.0, 128
          %767 = vxpose.xlu0.b32.cont [5/16] 0.0, 128
          %768 = vxpose.xlu0.b32.cont [6/16] 0.0, 128
          %769 = vxpose.xlu0.b32.cont [7/16] 0.0, 128
          %770 = vxpose.xlu0.b32.cont [8/16] 0.0, 128
          %771 = vxpose.xlu0.b32.cont [9/16] 0.0, 128
          %772 = vxpose.xlu0.b32.cont [10/16] 0.0, 128
          %773 = vxpose.xlu0.b32.cont [11/16] 0.0, 128
          %774 = vxpose.xlu0.b32.cont [12/16] 0.0, 128
          %775 = vxpose.xlu0.b32.cont [13/16] 0.0, 128
          %776 = vxpose.xlu0.b32.cont [14/16] 0.0, 128
          %777 = vxpose.xlu0.b32.cont [15/16] 0.0, 128
          %778 = vxpose.xlu0.b32.end [16/16] 0.0, 128
          %v779 = vpop.trf.xlu0
          %v780 = vpop.trf.xlu0
          %v781 = vpop.trf.xlu0
          %v782 = vpop.trf.xlu0
          %v783 = vpop.trf.xlu0
          %v784 = vpop.trf.xlu0
          %v785 = vpop.trf.xlu0
          %v786 = vpop.trf.xlu0
          %v787 = vpop.trf.xlu0
          %v788 = vpop.trf.xlu0
          %v789 = vpop.trf.xlu0
          %v790 = vpop.trf.xlu0
          %v791 = vpop.trf.xlu0
          %v792 = vpop.trf.xlu0
          %v793 = vpop.trf.xlu0
          %v794 = vpop.trf.xlu0
          %v796 = vsel %vm738, %v779, 0
          %v799 = vsel %vm738, %v780, 0
          %801 = vmatprep.subr.mxu0 0.0
          %802 = vmatpush1.msra.mxu0 0.0
          %803 = vmatprep.subr.mxu0 0.0
          %804 = vmatpush1.msra.mxu0 0.0
          %805 = vmatprep.subr.mxu0 0.0
          %806 = vmatpush1.msra.mxu0 0.0
          %807 = vmatprep.subr.mxu0 0.0
          %808 = vmatpush1.msra.mxu0 0.0
          %809 = vmatprep.subr.mxu0 0.0
          %810 = vmatpush1.msra.mxu0 0.0
          %811 = vmatprep.subr.mxu0 0.0
          %812 = vmatpush1.msra.mxu0 0.0
          %813 = vmatprep.subr.mxu0 0.0
          %814 = vmatpush1.msra.mxu0 0.0
          %815 = vmatprep.subr.mxu0 0.0
          %816 = vmatpush1.msra.mxu0 0.0
          %817 = vmatprep.subr.mxu0 0.0
          %818 = vmatpush1.msra.mxu0 0.0
          %819 = vmatprep.subr.mxu0 0.0
          %820 = vmatpush1.msra.mxu0 0.0
          %821 = vmatprep.subr.mxu0 0.0
          %822 = vmatpush1.msra.mxu0 0.0
          %823 = vmatprep.subr.mxu0 0.0
          %824 = vmatpush1.msra.mxu0 0.0
          %825 = vmatprep.subr.mxu0 0.0
          %826 = vmatpush1.msra.mxu0 0.0
          %827 = vmatprep.subr.mxu0 0.0
          %828 = vmatpush1.msra.mxu0 0.0
          %829 = vmatprep.subr.mxu0 0.0
          %830 = vmatpush1.msra.mxu0 %v762
          %831 = vmatprep.subr.mxu0 0.0
          %832 = vmatpush1.msra.mxu0 %v761
          %833 = vmatprep.subr.mxu0 0.0
          %834 = vmatpush2.msra.mxu0 0.0
          %835 = vmatprep.subr.mxu0 0.0
          %836 = vmatpush2.msra.mxu0 0.0
          %837 = vmatprep.subr.mxu0 0.0
          %838 = vmatpush2.msra.mxu0 0.0
          %839 = vmatprep.subr.mxu0 0.0
          %840 = vmatpush2.msra.mxu0 0.0
          %841 = vmatprep.subr.mxu0 0.0
          %842 = vmatpush2.msra.mxu0 0.0
          %843 = vmatprep.subr.mxu0 0.0
          %844 = vmatpush2.msra.mxu0 0.0
          %845 = vmatprep.subr.mxu0 0.0
          %846 = vmatpush2.msra.mxu0 0.0
          %847 = vmatprep.subr.mxu0 0.0
          %848 = vmatpush2.msra.mxu0 0.0
          %849 = vmatprep.subr.mxu0 0.0
          %850 = vmatpush2.msra.mxu0 0.0
          %851 = vmatprep.subr.mxu0 0.0
          %852 = vmatpush2.msra.mxu0 0.0
          %853 = vmatprep.subr.mxu0 0.0
          %854 = vmatpush2.msra.mxu0 0.0
          %855 = vmatprep.subr.mxu0 0.0
          %856 = vmatpush2.msra.mxu0 0.0
          %857 = vmatprep.subr.mxu0 0.0
          %858 = vmatpush2.msra.mxu0 0.0
          %859 = vmatprep.subr.mxu0 0.0
          %860 = vmatpush2.msra.mxu0 0.0
          %861 = vmatprep.subr.mxu0 0.0
          %862 = vmatpush2.msra.mxu0 0.0
          %863 = vmatprep.subr.mxu0 0.0
          %864 = vmatpush2.msra.mxu0 0.0
          %865 = vmatprep.mubr.f32.mxu0 0.0
          %866 = vmatmul.mubr.f32.gmra.mxu0 %v796
          %v867 = vpop.f32.mrf.mxu0
          %v868 = vadd.f32 0.0, %v867
          %v869 = vpop.f32.mrf.mxu0
          %870 = vmatprep.mubr.f32.mxu0 0.0
          %871 = vmatmul.mubr.f32.gmra.mxu0 %v799
          %v872 = vpop.f32.mrf.mxu0
          %v873 = vadd.f32 0.0, %v872
          %v874 = vpop.f32.mrf.mxu0
          %875 = vdwg.mxu0
          // Predicated region
          $region68: #{tpu_custom_call.1} parent=64 // pred_check
            %p876 = pneg %p315
          $region69: #{tpu_custom_call.1} parent=64 // pred_check_branch
            %878 = sbr.rel (%p876) target = $region71
          $region70: #{tpu_custom_call.1} parent=64 // pred_region
            %s879 = scalar_lea.vmem %s312, %s659 [#allocation11]
            %880 = vst [vmem:[%s879] sm:$0xff] %v868
            %881 = vst [vmem:[%s879 + $0x8] sm:$0xff] %v873
          $region71: #{tpu_custom_call.1} parent=64 // pred_fallthru
            _
          %p882 = scmp.ne.s32.totalorder %s30, 0
          // Predicated region
          $region72: #{tpu_custom_call.1} parent=64 // pred_check
            %p883 = pneg %p882
          $region73: #{tpu_custom_call.1} parent=64 // pred_check_branch
            %885 = sbr.rel (%p883) target = $region75
          $region74: #{tpu_custom_call.1} parent=64 // pred_region
            %s886 = scalar_lea.vmem %s312, %s659 [#allocation11]
            %v887 = vld [vmem:[%s886] sm:$0xff]
            %v888 = vld [vmem:[%s886 + $0x8] sm:$0xff]
            %v889 = vadd.f32 %v887, %v868
            %v890 = vadd.f32 %v888, %v873
            %891 = vst [vmem:[%s886] sm:$0xff] %v889
            %892 = vst [vmem:[%s886 + $0x8] sm:$0xff] %v890
          $region75: #{tpu_custom_call.1} parent=64 // pred_fallthru
            _
        $region65: #{tpu_custom_call.1} parent=43 // loop_footer
          %s651 = sadd.s32 1, %s647
        $region66: #{tpu_custom_call.1} parent=43 // loop_footer_branch
          %646 = sbr.rel target = $region62
        $region67: #{tpu_custom_call.1} parent=43 // loop_exit
          _
        // Predicated region
        $region76: #{tpu_custom_call.1} parent=43 // pred_check
          %p893 = pneg %p315
        $region77: #{tpu_custom_call.1} parent=43 // pred_check_branch
          %895 = sbr.rel (%p893) target = $region79
        $region78: #{tpu_custom_call.1} parent=43 // pred_region
          %s896 = sld [smem:[#allocation4]]
          %v897 = vld [vmem:[%s276] sm:$0xff]
          %v898 = vld [vmem:[%s276 + $0x8] sm:$0xff]
          %v899 = vld [vmem:[%s276 + $0x10] sm:$0xff]
          %v900 = vld [vmem:[%s276 + $0x18] sm:$0xff]
          %v901 = vld [vmem:[%s276 + $0x20] sm:$0xff]
          %v902 = vld [vmem:[%s276 + $0x28] sm:$0xff]
          %v903 = vld [vmem:[%s276 + $0x30] sm:$0xff]
          %v904 = vld [vmem:[%s276 + $0x38] sm:$0xff]
          %v905 = vld [vmem:[%s312] sm:$0xff]
          %v906 = vld [vmem:[%s312 + $0x8] sm:$0xff]
          %v907 = vld [vmem:[%s312 + $0x10] sm:$0xff]
          %v908 = vld [vmem:[%s312 + $0x18] sm:$0xff]
          %v909 = vld [vmem:[%s312 + $0x20] sm:$0xff]
          %v910 = vld [vmem:[%s312 + $0x28] sm:$0xff]
          %v911 = vld [vmem:[%s312 + $0x30] sm:$0xff]
          %v912 = vld [vmem:[%s312 + $0x38] sm:$0xff]
          %v913 = vstv %s896
          %v914 = vmul.f32 %v913, %v905
          %v915 = vmul.f32 %v913, %v906
          %v916 = vmul.f32 %v913, %v907
          %v917 = vmul.f32 %v913, %v908
          %v918 = vmul.f32 %v913, %v909
          %v919 = vmul.f32 %v913, %v910
          %v920 = vmul.f32 %v913, %v911
          %v921 = vmul.f32 %v913, %v912
          %v922 = vadd.f32 %v914, %v897
          %v923 = vadd.f32 %v915, %v898
          %v924 = vadd.f32 %v916, %v899
          %v925 = vadd.f32 %v917, %v900
          %v926 = vadd.f32 %v918, %v901
          %v927 = vadd.f32 %v919, %v902
          %v928 = vadd.f32 %v920, %v903
          %v929 = vadd.f32 %v921, %v904
          %930 = vst [vmem:[%s312] sm:$0xff] %v922
          %931 = vst [vmem:[%s312 + $0x8] sm:$0xff] %v923
          %932 = vst [vmem:[%s312 + $0x10] sm:$0xff] %v924
          %933 = vst [vmem:[%s312 + $0x18] sm:$0xff] %v925
          %934 = vst [vmem:[%s312 + $0x20] sm:$0xff] %v926
          %935 = vst [vmem:[%s312 + $0x28] sm:$0xff] %v927
          %936 = vst [vmem:[%s312 + $0x30] sm:$0xff] %v928
          %937 = vst [vmem:[%s312 + $0x38] sm:$0xff] %v929
        $region79: #{tpu_custom_call.1} parent=43 // pred_fallthru
          _
        %s938 = sand.u32 %s176, 1
        %s939 = scalar_lea.sflag [#allocation7], %s938
        %s940 = sand.u32 %s176, 1
        %s941 = smul.addr %s940, 64
        %s942 = scalar_lea.vmem [#allocation11], %s941
        // Predicated region
        $region80: #{tpu_custom_call.1} parent=43 // pred_check
          %p943 = pneg %p186
        $region81: #{tpu_custom_call.1} parent=43 // pred_check_branch
          %945 = sbr.rel (%p943) target = $region83
        $region82: #{tpu_custom_call.1} parent=43 // pred_region
          %s946 = smul.u32 4, %s29
          %s948 = ssub.s32 1024, 1024
          %949 = vsyncadd %s939, %s948
          %s950 = smul.addr %s946, 2
          %s951 = smul.addr %s950, 128
          %s952 = scalar_lea.hbm %s6, %s951
          %s953 = sshll.u32 %s942, 4
          %s954 = int_to_ptr.vmem [resolvable:$true] %s953
          %959 = dma.vmem_to_hbm [thread:$0]  %s954, 1024, %s952, %s939, 128, 128, 8
        $region83: #{tpu_custom_call.1} parent=43 // pred_fallthru
          _
      $region44: #{tpu_custom_call.1} parent=5 // pred_fallthru
        _
      %p960 = scmp.le.s32.totalorder 2, %s20
      // Predicated region
      $region84: #{tpu_custom_call.1} parent=5 // pred_check
        %p961 = pneg %p960
      $region85: #{tpu_custom_call.1} parent=5 // pred_check_branch
        %963 = sbr.rel (%p961) target = $region87
      $region86: #{tpu_custom_call.1} parent=5 // pred_region
        %s964 = ssub.s32 %s20, 2
        // Predicated region
        $region88: #{tpu_custom_call.1} parent=86 // pred_check
          %p965 = pneg %p192
        $region89: #{tpu_custom_call.1} parent=86 // pred_check_branch
          %967 = sbr.rel (%p965) target = $region91
        $region90: #{tpu_custom_call.1} parent=86 // pred_region
          %s968 = sand.u32 %s177, 1
          %s969 = scalar_lea.sflag [#allocation7], %s968
          %s970 = sand.u32 %s177, 1
          %s971 = smul.addr %s970, 64
          %s972 = scalar_lea.vmem [#allocation11], %s971
          %973 = dma.done %s969, 1024
        $region91: #{tpu_custom_call.1} parent=86 // pred_fallthru
          _
      $region87: #{tpu_custom_call.1} parent=5 // pred_fallthru
        _
    $region6: #{tpu_custom_call.1} parent=1 // loop_footer
      %s24 = sadd.s32 1, %s20
    $region7: #{tpu_custom_call.1} parent=1 // loop_footer_branch
      %19 = sbr.rel target = $region3
    $region8: #{tpu_custom_call.1} parent=1 // loop_exit
      _
    %974 = vsyncpa [#allocation6], 1
    %s975 = scalar_lea.sflag [#allocation6], 1
    %976 = vsyncpa %s975, 1
    %977 = vsyncpa [#allocation9], 1
    %978 = vsyncpa [#allocation7], 1
    %s979 = scalar_lea.sflag [#allocation7], 1
    %980 = vsyncpa %s979, 1

</llo_original>
